<compile_context>
chip_gen: v6e
topology: v6e:2x2x1
jax: 0.10.0
libtpu: 0.0.40
codegen_flags: <defaults>
</compile_context>

<pallas_src>
import functools

import jax
import jax.numpy as jnp
from jax.experimental import pallas as pl
from jax.experimental.pallas import tpu as pltpu

LEAKY_SLOPE = 0.01  # PyTorch nn.LeakyReLU default negative_slope

# Cleared the first time the lane-dense output layout fails to compile
# (older Mosaic may not support the (tb, A) -> (tb/group, 128) repack);
# later calls then go straight to the plain layout.
_DENSE_OUT_OK = True


def _actor_kernel(x_ref, w1_ref, b1_ref, w2_ref, b2_ref, o_ref, *, mxu_dtype):
    """Fused  x @ W1 + b1 -> LeakyReLU -> @ W2 + b2 -> softmax(dim=1)."""
    # ---- Linear 1 + LeakyReLU ----------------------------------------------
    x = x_ref[...]                                   # (tb, OBS)
    w1 = w1_ref[...]                                 # (OBS, H)
    if x.dtype != mxu_dtype:
        x = x.astype(mxu_dtype)
    if w1.dtype != mxu_dtype:
        w1 = w1.astype(mxu_dtype)
    h = jnp.dot(x, w1, preferred_element_type=jnp.float32)    # (tb, H) f32 acc
    h = h + b1_ref[...]                                        # bias broadcast
    h = jnp.maximum(h, LEAKY_SLOPE * h)                        # LeakyReLU (slope < 1)
    # TODO(synk): b1 could be folded into the first matmul (ones column on x);
    # skipped -- the in-kernel concat costs about what the single bias add does.

    # ---- Linear 2 -------------------------------------------------------------
    w2 = w2_ref[...]                                 # (H, A)
    if w2.dtype != mxu_dtype:
        w2 = w2.astype(mxu_dtype)
    hm = h if h.dtype == mxu_dtype else h.astype(mxu_dtype)
    logits = jnp.dot(hm, w2, preferred_element_type=jnp.float32)
    logits = logits + b2_ref[...]                    # (tb, A) f32

    # ---- Softmax over dim=1 (last axis) ---------------------------------------
    m = jnp.max(logits, axis=-1, keepdims=True)
    e = jnp.exp(logits - m)
    denom = jnp.sum(e, axis=-1, keepdims=True)
    probs = e * pl.reciprocal(denom, approx=True)    # EUP divide, ~1e-4 rel err

    # Plain layout: o_ref is (tb, A).  Lane-dense layout: o_ref is
    # (tb // group, group * A == 128); the reshape is the sublane->lane repack
    # and rides the otherwise idle XLU slot.
    o_ref[...] = probs.reshape(o_ref.shape)


def _pallas_forward(x_pad, w1, b1, w2, b2, *, tb, mxu_dtype, group):
    """Tiled grid call. group>1 -> lane-dense (B_pad/group, 128) output slab."""
    B_pad, OBS = x_pad.shape
    H = w1.shape[1]
    A = w2.shape[1]
    steps = B_pad // tb

    if group > 1:
        out_shape = jax.ShapeDtypeStruct((B_pad // group, group * A), jnp.float32)
        out_spec = pl.BlockSpec((tb // group, group * A), lambda i: (i, 0))
    else:
        out_shape = jax.ShapeDtypeStruct((B_pad, A), jnp.float32)
        out_spec = pl.BlockSpec((tb, A), lambda i: (i, 0))

    nbytes = lambda a: a.size * a.dtype.itemsize
    cost = pl.CostEstimate(
        flops=2 * B_pad * (OBS * H + H * A),
        transcendentals=B_pad * (A + 1),               # exp + reciprocal
        bytes_accessed=(nbytes(x_pad) + nbytes(w1) + nbytes(b1)
                        + nbytes(w2) + nbytes(b2) + B_pad * A * 4),
    )

    return pl.pallas_call(
        functools.partial(_actor_kernel, mxu_dtype=mxu_dtype),
        out_shape=out_shape,
        grid=(steps,),
        in_specs=[
            pl.BlockSpec((tb, OBS), lambda i: (i, 0)),   # x: tiled over batch
            # Constant index_map keeps the weights/biases VMEM-resident across
            # the whole grid (Pallas skips the re-copy when the block index
            # does not change).  pl.Buffered(1) would also drop their useless
            # second pipeline buffer, but that only saves ~20 KiB here.
            pl.BlockSpec((OBS, H), lambda i: (0, 0)),    # w1
            pl.BlockSpec((1, H), lambda i: (0, 0)),      # b1
            pl.BlockSpec((H, A), lambda i: (0, 0)),      # w2
            pl.BlockSpec((1, A), lambda i: (0, 0)),      # b2
        ],
        out_specs=out_spec,
        compiler_params=pltpu.CompilerParams(
            # Batch axis is embarrassingly parallel -> sharded across both TCs on v7x.
            dimension_semantics=("parallel",),
            # v5e's scoped-VMEM default is 16 MiB; raise it so tiles up to 4096
            # rows (lane-padded, double-buffered) still compile there.
            vmem_limit_bytes=32 * 1024 * 1024,
        ),
        cost_estimate=cost,
    )(x_pad, w1, b1, w2, b2)


def actor_forward(x, w1, b1, w2, b2, *, tile_b=2048, mxu_dtype=jnp.bfloat16,
                  no_grid_max_batch=512):
    """x: (B, obs) f32 or bf16; returns (B, action_size) f32 softmax probs.

    Pass bf16 `x` directly if the producer can emit it -- x is the dominant HBM
    traffic and the kernel casts to `mxu_dtype` internally either way (do NOT
    add a wrapper-side astype; that is an extra HBM round trip).
    """
    global _DENSE_OUT_OK
    mxu_dtype = jnp.dtype(mxu_dtype)
    B, OBS = x.shape
    A = w2.shape[1]

    # ---- small batches: one grid-less full-block call (no pipeline setup) -----
    if B <= min(no_grid_max_batch, tile_b):
        B_pad = ((B + 7) // 8) * 8
        xp = jnp.pad(x, ((0, B_pad - B), (0, 0))) if B_pad != B else x
        out = pl.pallas_call(
            functools.partial(_actor_kernel, mxu_dtype=mxu_dtype),
            out_shape=jax.ShapeDtypeStruct((B_pad, A), jnp.float32),
        )(xp, w1, b1, w2, b2)
        return out[:B]

    # ---- large batches: 1-D "parallel" grid over batch tiles ------------------
    # Lane-dense output packing is possible whenever A divides 128.
    group = 128 // A if (A < 128 and 128 % A == 0) else 1
    # Alignment: 8 sublanes for x; with packing also (tb // group) % 8 == 0.
    align = 8 * group if group > 1 else 8

    tb = min(tile_b, B)
    tb = max(align, (tb // align) * align)
    # Keep >= 2 grid steps so the parallel axis can occupy both TensorCores on
    # v7x (a 1-step grid leaves one TC idle there; harmless on v5e/v6e).
    if pl.cdiv(B, tb) < 2:
        half = ((pl.cdiv(B, 2) + align - 1) // align) * align
        tb = max(align, min(tb, half))
    B_pad = pl.cdiv(B, tb) * tb
    xp = jnp.pad(x, ((0, B_pad - B), (0, 0))) if B_pad != B else x

    if group > 1 and _DENSE_OUT_OK:
        try:
            out = _pallas_forward(xp, w1, b1, w2, b2, tb=tb,
                                  mxu_dtype=mxu_dtype, group=group)
            # (B_pad//group, 128) row-major has exactly the byte order of
            # (B_pad, A) row-major: this reshape is metadata-only.
            return out.reshape(B_pad, A)[:B]
        except Exception:
            # Mosaic on this chip/jax version can't do the in-register repack;
            # remember that and use the plain (B_pad, A) layout from now on.
            _DENSE_OUT_OK = False

    out = _pallas_forward(xp, w1, b1, w2, b2, tb=tb, mxu_dtype=mxu_dtype, group=1)
    return out[:B]


def init_actor_params(key, observation_size, action_size, hidden=128):
    """Deterministic init mirroring nn.Linear's U(-1/sqrt(fan_in), 1/sqrt(fan_in)).
    Weights stored transposed as (in, out)."""
    k1, k2, k3, k4 = jax.random.split(key, 4)
    bound1 = 1.0 / jnp.sqrt(observation_size)
    bound2 = 1.0 / jnp.sqrt(hidden)
    w1 = jax.random.uniform(k1, (observation_size, hidden), jnp.float32, -bound1, bound1)
    b1 = jax.random.uniform(k2, (1, hidden), jnp.float32, -bound1, bound1)
    w2 = jax.random.uniform(k3, (hidden, action_size), jnp.float32, -bound2, bound2)
    b2 = jax.random.uniform(k4, (1, action_size), jnp.float32, -bound2, bound2)
    return w1, b1, w2, b2


def reference_forward(x, w1, b1, w2, b2):
    x = x.astype(jnp.float32)
    h = x @ w1 + b1
    h = jnp.where(h > 0, h, LEAKY_SLOPE * h)
    return jax.nn.softmax(h @ w2 + b2, axis=1)


if __name__ == "__main__":
    key = jax.random.PRNGKey(0)
    kx, kp, kx2, kx3 = jax.random.split(key, 4)

    observation_size = 16
    action_size = 4
    w1, b1, w2, b2 = init_actor_params(kp, observation_size, action_size)

    # 1) Tiny batch -> grid-less fast path; f32 MXU for a tight numeric check.
    x = jax.random.normal(kx, (8, observation_size), jnp.float32)
    out = jax.block_until_ready(
        actor_forward(x, w1, b1, w2, b2, mxu_dtype=jnp.float32))
    ref = reference_forward(x, w1, b1, w2, b2)
    assert out.shape == (8, action_size)
    assert jnp.allclose(out, ref, atol=5e-3, rtol=5e-3)
    assert jnp.allclose(jnp.sum(out, axis=1), 1.0, atol=5e-3)

    # 2) Non-multiple-of-8 batch (padding path), default bf16 MXU inputs.
    x2 = jax.random.normal(kx2, (20, observation_size), jnp.float32)
    out2 = jax.block_until_ready(actor_forward(x2, w1, b1, w2, b2))
    ref2 = reference_forward(x2, w1, b1, w2, b2)
    assert out2.shape == (20, action_size)
    assert jnp.allclose(out2, ref2, atol=2e-2, rtol=2e-2)
    assert jnp.allclose(jnp.sum(out2, axis=1), 1.0, atol=5e-3)

    # 3) Batch large enough for the tiled grid path (>=2 "parallel" steps,
    #    lane-dense output slab), default bf16 MXU inputs.
    x3 = jax.random.normal(kx3, (1024, observation_size), jnp.float32)
    out3 = jax.block_until_ready(actor_forward(x3, w1, b1, w2, b2))
    ref3 = reference_forward(x3, w1, b1, w2, b2)
    assert out3.shape == (1024, action_size)
    assert jnp.allclose(out3, ref3, atol=2e-2, rtol=2e-2)
    assert jnp.allclose(jnp.sum(out3, axis=1), 1.0, atol=5e-3)

    print("KERNEL_OK")
</pallas_src>

<mosaic_0001>
module attributes {stable_mosaic.version = 11 : i64} {
  func.func @_actor_kernel(%arg0: memref<8x16xf32, #tpu.memory_space<vmem>>, %arg1: memref<16x128xf32, #tpu.memory_space<vmem>>, %arg2: memref<1x128xf32, #tpu.memory_space<vmem>>, %arg3: memref<128x4xf32, #tpu.memory_space<vmem>>, %arg4: memref<1x4xf32, #tpu.memory_space<vmem>>, %arg5: memref<8x4xf32, #tpu.memory_space<vmem>>) attributes {dimension_semantics = [], scalar_prefetch = 0 : i64, scratch_operands = 0 : i64, tpu.core_type = #tpu.core_type<tc>} {
    %c0 = arith.constant 0 : index
    %c0_0 = arith.constant 0 : index
    %0 = vector.load %arg0[%c0, %c0_0] : memref<8x16xf32, #tpu.memory_space<vmem>>, vector<8x16xf32>
    %c0_1 = arith.constant 0 : index
    %c0_2 = arith.constant 0 : index
    %1 = vector.load %arg1[%c0_1, %c0_2] : memref<16x128xf32, #tpu.memory_space<vmem>>, vector<16x128xf32>
    %cst = arith.constant dense<0.000000e+00> : vector<8x128xf32>
    %2 = tpu.matmul %0, %1, %cst {dimension_numbers = #tpu.dot_dimension_numbers<[1], [0], [0], [1], [0, 0, 1, 1], [], []>} : vector<8x16xf32>, vector<16x128xf32>, vector<8x128xf32> -> vector<8x128xf32>
    %c0_3 = arith.constant 0 : index
    %c0_4 = arith.constant 0 : index
    %3 = vector.load %arg2[%c0_3, %c0_4] : memref<1x128xf32, #tpu.memory_space<vmem>>, vector<1x128xf32>
    %4 = vector.broadcast %3 : vector<1x128xf32> to vector<8x128xf32>
    %5 = arith.addf %2, %4 : vector<8x128xf32>
    %cst_5 = arith.constant 0.00999999977 : f32
    %6 = vector.broadcast %cst_5 : f32 to vector<8x128xf32>
    %7 = arith.mulf %6, %5 : vector<8x128xf32>
    %8 = arith.maximumf %5, %7 : vector<8x128xf32>
    %c0_6 = arith.constant 0 : index
    %c0_7 = arith.constant 0 : index
    %9 = vector.load %arg3[%c0_6, %c0_7] : memref<128x4xf32, #tpu.memory_space<vmem>>, vector<128x4xf32>
    %cst_8 = arith.constant dense<0.000000e+00> : vector<8x4xf32>
    %10 = tpu.matmul %8, %9, %cst_8 {dimension_numbers = #tpu.dot_dimension_numbers<[1], [0], [0], [1], [0, 0, 1, 1], [], []>} : vector<8x128xf32>, vector<128x4xf32>, vector<8x4xf32> -> vector<8x4xf32>
    %c0_9 = arith.constant 0 : index
    %c0_10 = arith.constant 0 : index
    %11 = vector.load %arg4[%c0_9, %c0_10] : memref<1x4xf32, #tpu.memory_space<vmem>>, vector<1x4xf32>
    %12 = vector.broadcast %11 : vector<1x4xf32> to vector<8x4xf32>
    %13 = arith.addf %10, %12 : vector<8x4xf32>
    %cst_11 = arith.constant dense<0xFF800000> : vector<8xf32>
    %14 = vector.multi_reduction <maximumf>, %13, %cst_11 [1] : vector<8x4xf32> to vector<8xf32>
    %15 = vector.shape_cast %14 : vector<8xf32> to vector<8x1xf32>
    %16 = vector.broadcast %15 : vector<8x1xf32> to vector<8x4xf32>
    %17 = arith.subf %13, %16 : vector<8x4xf32>
    %18 = math.exp %17 : vector<8x4xf32>
    %cst_12 = arith.constant dense<0.000000e+00> : vector<8xf32>
    %19 = vector.multi_reduction <add>, %18, %cst_12 [1] : vector<8x4xf32> to vector<8xf32>
    %20 = vector.shape_cast %19 : vector<8xf32> to vector<8x1xf32>
    %21 = tpu.reciprocal %20 {approx = true} : vector<8x1xf32> -> vector<8x1xf32>
    %22 = vector.broadcast %21 : vector<8x1xf32> to vector<8x4xf32>
    %23 = arith.mulf %18, %22 : vector<8x4xf32>
    %c0_13 = arith.constant 0 : index
    %c0_14 = arith.constant 0 : index
    %24 = vector.load %arg5[%c0_13, %c0_14] : memref<8x4xf32, #tpu.memory_space<vmem>>, vector<8x4xf32>
    tpu.vector_store %arg5[%c0_13, %c0_14], %23 {strides = array<i32>} : memref<8x4xf32, #tpu.memory_space<vmem>>, vector<8x4xf32>,
    return
  }
}

</mosaic_0001>

<llo_original>
// kernel: tpu_custom_call.1
$region0: #{tpu_custom_call.1}
  #allocation0 [shape = 'u32[]', space=smem, size = 0x4, offset = 0x4, fixed_abs, tag = 'smem constant byte address 0x4 - core index']
  #allocation1 [shape = 'u32[144,128]{1,0:T(1,128)}', space=vmem, size = 0x12000, scoped, tag = 'internal scratch']
  %s0 = inlined_call_operand.vmem [shape: f32[8,16], index: 0, kind: input, shape index: {}]
  %s1 = inlined_call_operand.vmem [shape: f32[16,128], index: 1, kind: input, shape index: {}]
  %s2 = inlined_call_operand.vmem [shape: f32[1,128], index: 2, kind: input, shape index: {}]
  %s3 = inlined_call_operand.vmem [shape: f32[128,4], index: 3, kind: input, shape index: {}]
  %s4 = inlined_call_operand.vmem [shape: f32[1,4], index: 4, kind: input, shape index: {}]
  %s5 = inlined_call_operand.vmem [shape: f32[8,4], index: 5, kind: output, shape index: {}]
  %s6 = sld [smem:[#allocation0]]
  $region30: #{tpu_custom_call.1} parent=0
    _
  %s8 = ssub.s32 1, %s6
  %s9 = scalar_select 0, %s8, %s6
  // Predicated region
  $region2: #{tpu_custom_call.1} parent=0 // pred_check
    _
  $region3: #{tpu_custom_call.1} parent=0 // pred_check_branch
    %11 = sbr.rel (0) target = $region5
  $region4: #{tpu_custom_call.1} parent=0 // pred_region
    _
  $region5: #{tpu_custom_call.1} parent=0 // pred_fallthru
    _
  // Predicated region
  $region6: #{tpu_custom_call.1} parent=0 // pred_check
    _
  $region7: #{tpu_custom_call.1} parent=0 // pred_check_branch
    %13 = sbr.rel (0) target = $region9
  $region8: #{tpu_custom_call.1} parent=0 // pred_region
    _
  $region9: #{tpu_custom_call.1} parent=0 // pred_fallthru
    _
  // Predicated region
  $region10: #{tpu_custom_call.1} parent=0 // pred_check
    _
  $region11: #{tpu_custom_call.1} parent=0 // pred_check_branch
    %15 = sbr.rel (0) target = $region13
  $region12: #{tpu_custom_call.1} parent=0 // pred_region
    _
  $region13: #{tpu_custom_call.1} parent=0 // pred_fallthru
    _
  // Predicated region
  $region14: #{tpu_custom_call.1} parent=0 // pred_check
    _
  $region15: #{tpu_custom_call.1} parent=0 // pred_check_branch
    %17 = sbr.rel (0) target = $region17
  $region16: #{tpu_custom_call.1} parent=0 // pred_region
    _
  $region17: #{tpu_custom_call.1} parent=0 // pred_fallthru
    _
  // Predicated region
  $region18: #{tpu_custom_call.1} parent=0 // pred_check
    _
  $region19: #{tpu_custom_call.1} parent=0 // pred_check_branch
    %19 = sbr.rel (0) target = $region21
  $region20: #{tpu_custom_call.1} parent=0 // pred_region
    _
  $region21: #{tpu_custom_call.1} parent=0 // pred_fallthru
    _
  %v20 = vld [vmem:[%s0] sm:$0xff]
  %v21 = vld [vmem:[%s1] sm:$0xff]
  %v22 = vld [vmem:[%s1 + $0x8] sm:$0xff]
  %v23 = vld [vmem:[%s2] sm:$0x1]
  %v25 = vlaneseq
  %v26 = vshrl.u32 %v25, 7
  %v27 = vsub.s32 0, %v26
  %v28 = vrot.slane %v23, %v27
  %vm30 = vcmask 130048
  %v32 = vsel %vm30, %v20, 0
  %34 = vmatprep.subr.mxu0 0.0
  %35 = vmatpush1.msra.mxu0 0.0
  %36 = vmatprep.subr.mxu0 0.0
  %37 = vmatpush1.msra.mxu0 0.0
  %38 = vmatprep.subr.mxu0 0.0
  %39 = vmatpush1.msra.mxu0 0.0
  %40 = vmatprep.subr.mxu0 0.0
  %41 = vmatpush1.msra.mxu0 0.0
  %42 = vmatprep.subr.mxu0 0.0
  %43 = vmatpush1.msra.mxu0 0.0
  %44 = vmatprep.subr.mxu0 0.0
  %45 = vmatpush1.msra.mxu0 0.0
  %46 = vmatprep.subr.mxu0 0.0
  %47 = vmatpush1.msra.mxu0 0.0
  %48 = vmatprep.subr.mxu0 0.0
  %49 = vmatpush1.msra.mxu0 0.0
  %50 = vmatprep.subr.mxu0 0.0
  %51 = vmatpush1.msra.mxu0 0.0
  %52 = vmatprep.subr.mxu0 0.0
  %53 = vmatpush1.msra.mxu0 0.0
  %54 = vmatprep.subr.mxu0 0.0
  %55 = vmatpush1.msra.mxu0 0.0
  %56 = vmatprep.subr.mxu0 0.0
  %57 = vmatpush1.msra.mxu0 0.0
  %58 = vmatprep.subr.mxu0 0.0
  %59 = vmatpush1.msra.mxu0 0.0
  %60 = vmatprep.subr.mxu0 0.0
  %61 = vmatpush1.msra.mxu0 0.0
  %62 = vmatprep.subr.mxu0 0.0
  %63 = vmatpush1.msra.mxu0 %v22
  %64 = vmatprep.subr.mxu0 0.0
  %65 = vmatpush1.msra.mxu0 %v21
  %66 = vmatprep.subr.mxu0 0.0
  %67 = vmatpush2.msra.mxu0 0.0
  %68 = vmatprep.subr.mxu0 0.0
  %69 = vmatpush2.msra.mxu0 0.0
  %70 = vmatprep.subr.mxu0 0.0
  %71 = vmatpush2.msra.mxu0 0.0
  %72 = vmatprep.subr.mxu0 0.0
  %73 = vmatpush2.msra.mxu0 0.0
  %74 = vmatprep.subr.mxu0 0.0
  %75 = vmatpush2.msra.mxu0 0.0
  %76 = vmatprep.subr.mxu0 0.0
  %77 = vmatpush2.msra.mxu0 0.0
  %78 = vmatprep.subr.mxu0 0.0
  %79 = vmatpush2.msra.mxu0 0.0
  %80 = vmatprep.subr.mxu0 0.0
  %81 = vmatpush2.msra.mxu0 0.0
  %82 = vmatprep.subr.mxu0 0.0
  %83 = vmatpush2.msra.mxu0 0.0
  %84 = vmatprep.subr.mxu0 0.0
  %85 = vmatpush2.msra.mxu0 0.0
  %86 = vmatprep.subr.mxu0 0.0
  %87 = vmatpush2.msra.mxu0 0.0
  %88 = vmatprep.subr.mxu0 0.0
  %89 = vmatpush2.msra.mxu0 0.0
  %90 = vmatprep.subr.mxu0 0.0
  %91 = vmatpush2.msra.mxu0 0.0
  %92 = vmatprep.subr.mxu0 0.0
  %93 = vmatpush2.msra.mxu0 0.0
  %94 = vmatprep.subr.mxu0 0.0
  %95 = vmatpush2.msra.mxu0 0.0
  %96 = vmatprep.subr.mxu0 0.0
  %97 = vmatpush2.msra.mxu0 0.0
  %98 = vmatprep.mubr.f32.mxu0 0.0
  %99 = vmatmul.mubr.f32.gmra.mxu0 %v32
  %v100 = vpop.f32.mrf.mxu0
  %v101 = vadd.f32 %v28, %v100
  %v102 = vpop.f32.mrf.mxu0
  %103 = vdwg.mxu0
  %v104 = vmul.f32 %v101, 0.01
  %v105 = vmax.f32 %v101, %v104
  %v106 = vld [vmem:[%s3] sm:$0xff]
  %v107 = vld [vmem:[%s3 + $0x8] sm:$0xff]
  %v108 = vld [vmem:[%s3 + $0x10] sm:$0xff]
  %v109 = vld [vmem:[%s3 + $0x18] sm:$0xff]
  %v110 = vld [vmem:[%s3 + $0x20] sm:$0xff]
  %v111 = vld [vmem:[%s3 + $0x28] sm:$0xff]
  %v112 = vld [vmem:[%s3 + $0x30] sm:$0xff]
  %v113 = vld [vmem:[%s3 + $0x38] sm:$0xff]
  %v114 = vld [vmem:[%s3 + $0x40] sm:$0xff]
  %v115 = vld [vmem:[%s3 + $0x48] sm:$0xff]
  %v116 = vld [vmem:[%s3 + $0x50] sm:$0xff]
  %v117 = vld [vmem:[%s3 + $0x58] sm:$0xff]
  %v118 = vld [vmem:[%s3 + $0x60] sm:$0xff]
  %v119 = vld [vmem:[%s3 + $0x68] sm:$0xff]
  %v120 = vld [vmem:[%s3 + $0x70] sm:$0xff]
  %v121 = vld [vmem:[%s3 + $0x78] sm:$0xff]
  %v122 = vld [vmem:[%s4] sm:$0x1]
  %v124 = vlaneseq
  %v125 = vshrl.u32 %v124, 7
  %v126 = vsub.s32 0, %v125
  %v127 = vrot.slane %v122, %v126
  %129 = vmatprep.subr.mxu0 0.0
  %130 = vmatpush1.msra.mxu0 %v121
  %131 = vmatprep.subr.mxu0 0.0
  %132 = vmatpush1.msra.mxu0 %v120
  %133 = vmatprep.subr.mxu0 0.0
  %134 = vmatpush1.msra.mxu0 %v119
  %135 = vmatprep.subr.mxu0 0.0
  %136 = vmatpush1.msra.mxu0 %v118
  %137 = vmatprep.subr.mxu0 0.0
  %138 = vmatpush1.msra.mxu0 %v117
  %139 = vmatprep.subr.mxu0 0.0
  %140 = vmatpush1.msra.mxu0 %v116
  %141 = vmatprep.subr.mxu0 0.0
  %142 = vmatpush1.msra.mxu0 %v115
  %143 = vmatprep.subr.mxu0 0.0
  %144 = vmatpush1.msra.mxu0 %v114
  %145 = vmatprep.subr.mxu0 0.0
  %146 = vmatpush1.msra.mxu0 %v113
  %147 = vmatprep.subr.mxu0 0.0
  %148 = vmatpush1.msra.mxu0 %v112
  %149 = vmatprep.subr.mxu0 0.0
  %150 = vmatpush1.msra.mxu0 %v111
  %151 = vmatprep.subr.mxu0 0.0
  %152 = vmatpush1.msra.mxu0 %v110
  %153 = vmatprep.subr.mxu0 0.0
  %154 = vmatpush1.msra.mxu0 %v109
  %155 = vmatprep.subr.mxu0 0.0
  %156 = vmatpush1.msra.mxu0 %v108
  %157 = vmatprep.subr.mxu0 0.0
  %158 = vmatpush1.msra.mxu0 %v107
  %159 = vmatprep.subr.mxu0 0.0
  %160 = vmatpush1.msra.mxu0 %v106
  %161 = vmatprep.subr.mxu0 0.0
  %162 = vmatpush2.msra.mxu0 0.0
  %163 = vmatprep.subr.mxu0 0.0
  %164 = vmatpush2.msra.mxu0 0.0
  %165 = vmatprep.subr.mxu0 0.0
  %166 = vmatpush2.msra.mxu0 0.0
  %167 = vmatprep.subr.mxu0 0.0
  %168 = vmatpush2.msra.mxu0 0.0
  %169 = vmatprep.subr.mxu0 0.0
  %170 = vmatpush2.msra.mxu0 0.0
  %171 = vmatprep.subr.mxu0 0.0
  %172 = vmatpush2.msra.mxu0 0.0
  %173 = vmatprep.subr.mxu0 0.0
  %174 = vmatpush2.msra.mxu0 0.0
  %175 = vmatprep.subr.mxu0 0.0
  %176 = vmatpush2.msra.mxu0 0.0
  %177 = vmatprep.subr.mxu0 0.0
  %178 = vmatpush2.msra.mxu0 0.0
  %179 = vmatprep.subr.mxu0 0.0
  %180 = vmatpush2.msra.mxu0 0.0
  %181 = vmatprep.subr.mxu0 0.0
  %182 = vmatpush2.msra.mxu0 0.0
  %183 = vmatprep.subr.mxu0 0.0
  %184 = vmatpush2.msra.mxu0 0.0
  %185 = vmatprep.subr.mxu0 0.0
  %186 = vmatpush2.msra.mxu0 0.0
  %187 = vmatprep.subr.mxu0 0.0
  %188 = vmatpush2.msra.mxu0 0.0
  %189 = vmatprep.subr.mxu0 0.0
  %190 = vmatpush2.msra.mxu0 0.0
  %191 = vmatprep.subr.mxu0 0.0
  %192 = vmatpush2.msra.mxu0 0.0
  %193 = vmatprep.mubr.f32.mxu0 0.0
  %194 = vmatmul.mubr.f32.gmra.mxu0 %v105
  %v195 = vpop.f32.mrf.mxu0
  %v196 = vadd.f32 %v127, %v195
  %v197 = vpop.f32.mrf.mxu0
  %198 = vdwg.mxu0
  %vm199 = vcmask 31744
  %v200 = vsel %vm199, %v196, -inf
  %201 = vmax.xlane.f32.xlu0 %v200
  %v202 = vpop.xlane.xlu0 %201
  %v203 = vsub.f32 %v196, %v202
  %v204 = vmul.f32 %v203, 1.442695
  %v205 = vpow.pop %v204
  %v206 = vsel %vm199, %v205, 0.0
  %207 = vadd.xlane.f32.xlu0 %v206
  %v208 = vpop.xlane.xlu0 %207
  %v209 = vrcp.pop %v208
  %v210 = vmul.f32 %v205, %v209
  %211 = vst.msk [vmem:[%s5] sm:$0xff] %vm199, %v210
  // Predicated region
  $region22: #{tpu_custom_call.1} parent=0 // pred_check
    _
  $region23: #{tpu_custom_call.1} parent=0 // pred_check_branch
    %213 = sbr.rel (0) target = $region25
  $region24: #{tpu_custom_call.1} parent=0 // pred_region
    _
  $region25: #{tpu_custom_call.1} parent=0 // pred_fallthru
    _
  // Predicated region
  $region26: #{tpu_custom_call.1} parent=0 // pred_check
    _
  $region27: #{tpu_custom_call.1} parent=0 // pred_check_branch
    %215 = sbr.rel (0) target = $region29
  $region28: #{tpu_custom_call.1} parent=0 // pred_region
    _
  $region29: #{tpu_custom_call.1} parent=0 // pred_fallthru
    _

</llo_original>
